<compile_context>
chip_gen: v7x
topology: tpu7x:2x2x1
jax: 0.10.0
libtpu: 0.0.40
codegen_flags: <defaults>
</compile_context>

<pallas_src>
import jax
import jax.numpy as jnp
from jax.experimental import pallas as pl
from jax.experimental.pallas import tpu as pltpu

IN_F, H1, H2, H3, OUT_F = 1, 64, 64, 64, 2
TB_MAX = 8192   # max batch-tile width (lanes); (64, 8192) f32 slab = 2 MiB
TB_MIN = 128    # lane width / minimum tile


def _pick_tb(batch):
    """Batch-tile width: as large as possible (amortize per-grid-step overhead),
    capped at TB_MAX, a multiple of 128, and small enough that there are at
    least two tiles whenever batch > 128 (v7x has 2 TensorCores and the
    "parallel" batch axis is the only thing sharding work across them)."""
    tb = -(-batch // 2)                              # cdiv(batch, 2) -> >= 2 tiles
    tb = ((tb + TB_MIN - 1) // TB_MIN) * TB_MIN      # round up to lane width
    return max(TB_MIN, min(TB_MAX, tb))


def mlp_kernel(x_ref,
               w0_ref, b0_ref,
               w1_ref, b1_ref,
               w2_ref, b2_ref,
               w3_ref, b3_ref,
               o_ref):
    # x_ref: (IN_F, TB) = (1, TB); weights are (out_f, in_f); biases (out_f, 1).
    x = x_ref[...]                                                   # (1, TB)

    # Layer 0: contraction depth K=1 -> broadcast multiply (VPU), skip the MXU.
    h = jnp.tanh(w0_ref[...] * x + b0_ref[...])                      # (H1, TB)

    # Layers 1-2: (64,64) @ (64,TB) on the MXU, f32 accumulate, tanh on EUP.
    h = jnp.tanh(jnp.dot(w1_ref[...], h,
                         preferred_element_type=jnp.float32) + b1_ref[...])
    h = jnp.tanh(jnp.dot(w2_ref[...], h,
                         preferred_element_type=jnp.float32) + b2_ref[...])

    # Output layer: (2,64) @ (64,TB) -> lane-dense (OUT_F, TB) store.
    y = jnp.dot(w3_ref[...], h, preferred_element_type=jnp.float32) + b3_ref[...]
    o_ref[...] = y.astype(o_ref.dtype)                               # (OUT_F, TB)


def mlp_forward(x, params):
    """x: (B, IN_F) float32 (same layout as the PyTorch module). Returns (B, OUT_F)."""
    B = x.shape[0]
    TB = _pick_tb(B)
    n_tiles = pl.cdiv(B, TB)
    B_pad = n_tiles * TB

    # Transpose to batch-on-lanes and pad batch to a multiple of TB.
    xt = jnp.pad(x, ((0, B_pad - B), (0, 0))).T                      # (IN_F, B_pad)

    w0, b0, w1, b1, w2, b2, w3, b3 = (
        params["w0"], params["b0"], params["w1"], params["b1"],
        params["w2"], params["b2"], params["w3"], params["b3"],
    )

    # Weights/biases: full-array blocks, constant index_map -> VMEM-resident
    # across all batch tiles (DMA'd once).
    resident = lambda a: pl.BlockSpec(a.shape, lambda i: (0,) * a.ndim)

    weight_bytes = sum(int(a.size) * 4 for a in (w0, b0, w1, b1, w2, b2, w3, b3))
    cost = pl.CostEstimate(
        flops=2 * B_pad * (IN_F * H1 + H1 * H2 + H2 * H3 + H3 * OUT_F),
        transcendentals=3 * H1 * B_pad,
        bytes_accessed=4 * B_pad * (IN_F + OUT_F) + weight_bytes,
    )

    out_t = pl.pallas_call(
        mlp_kernel,
        out_shape=jax.ShapeDtypeStruct((OUT_F, B_pad), jnp.float32),
        grid=(n_tiles,),
        in_specs=[pl.BlockSpec((IN_F, TB), lambda i: (0, i)),
                  resident(w0), resident(b0),
                  resident(w1), resident(b1),
                  resident(w2), resident(b2),
                  resident(w3), resident(b3)],
        out_specs=pl.BlockSpec((OUT_F, TB), lambda i: (0, i)),
        compiler_params=pltpu.CompilerParams(
            # v7x: shard batch tiles across both TensorCores.
            dimension_semantics=("parallel",),
            # Headroom vs v5e's 16 MiB scoped default when TB is large.
            vmem_limit_bytes=64 << 20),
        cost_estimate=cost,
    )(xt, w0, b0, w1, b1, w2, b2, w3, b3)

    # Back to batch-major and drop padding rows.
    return out_t.T[:B]


def init_params(key):
    """Deterministic init mimicking nn.Linear; weights stored (out_f, in_f)."""
    def linear(key, fan_in, fan_out):
        kw, kb = jax.random.split(key)
        bound = 1.0 / jnp.sqrt(fan_in)
        w = jax.random.uniform(kw, (fan_out, fan_in), jnp.float32, -bound, bound)
        b = jax.random.uniform(kb, (fan_out, 1), jnp.float32, -bound, bound)
        return w, b

    k0, k1, k2, k3 = jax.random.split(key, 4)
    w0, b0 = linear(k0, IN_F, H1)
    w1, b1 = linear(k1, H1, H2)
    w2, b2 = linear(k2, H2, H3)
    w3, b3 = linear(k3, H3, OUT_F)
    return dict(w0=w0, b0=b0, w1=w1, b1=b1, w2=w2, b2=b2, w3=w3, b3=b3)


def _reference(x, params):
    # Pure-JAX reference (PyTorch layout: y = x @ W.T + b).
    h = jnp.tanh(x @ params["w0"].T + params["b0"].T)
    h = jnp.tanh(h @ params["w1"].T + params["b1"].T)
    h = jnp.tanh(h @ params["w2"].T + params["b2"].T)
    return h @ params["w3"].T + params["b3"].T


if __name__ == "__main__":
    key = jax.random.PRNGKey(0)
    kp, kx, kx2 = jax.random.split(key, 3)

    params = init_params(kp)

    # Small example matching the module's expected input (batch, in_features=1).
    B = 8
    x = jax.random.normal(kx, (B, IN_F), jnp.float32)
    out = jax.block_until_ready(mlp_forward(x, params))
    ref = _reference(x, params)
    assert out.shape == (B, OUT_F)
    assert jnp.allclose(out, ref, atol=1e-5, rtol=1e-5)

    # Also exercise the multi-tile (grid > 1) + padding path.
    B2 = 300
    x2 = jax.random.normal(kx2, (B2, IN_F), jnp.float32)
    out2 = jax.block_until_ready(mlp_forward(x2, params))
    ref2 = _reference(x2, params)
    assert out2.shape == (B2, OUT_F)
    assert jnp.allclose(out2, ref2, atol=1e-5, rtol=1e-5)

    print("KERNEL_OK")
</pallas_src>

<mosaic_0001>
module attributes {stable_mosaic.version = 11 : i64} {
  func.func @mlp_kernel(%arg0: i32, %arg1: memref<1x128xf32, #tpu.memory_space<vmem>>, %arg2: memref<64x1xf32, #tpu.memory_space<vmem>>, %arg3: memref<64x1xf32, #tpu.memory_space<vmem>>, %arg4: memref<64x64xf32, #tpu.memory_space<vmem>>, %arg5: memref<64x1xf32, #tpu.memory_space<vmem>>, %arg6: memref<64x64xf32, #tpu.memory_space<vmem>>, %arg7: memref<64x1xf32, #tpu.memory_space<vmem>>, %arg8: memref<2x64xf32, #tpu.memory_space<vmem>>, %arg9: memref<2x1xf32, #tpu.memory_space<vmem>>, %arg10: memref<2x128xf32, #tpu.memory_space<vmem>>) attributes {dimension_semantics = [#tpu.dimension_semantics<parallel>], iteration_bounds = array<i64: 1>, scalar_prefetch = 0 : i64, scratch_operands = 0 : i64, tpu.core_type = #tpu.core_type<tc>, window_params = [{transform_indices = @transform_0, window_bounds = array<i64: 1, 128>}, {pipeline_mode = #tpu.pipeline_mode<synchronous>, transform_indices = @transform_1, window_bounds = array<i64: 64, 1>}, {pipeline_mode = #tpu.pipeline_mode<synchronous>, transform_indices = @transform_2, window_bounds = array<i64: 64, 1>}, {pipeline_mode = #tpu.pipeline_mode<synchronous>, transform_indices = @transform_3, window_bounds = array<i64: 64, 64>}, {pipeline_mode = #tpu.pipeline_mode<synchronous>, transform_indices = @transform_4, window_bounds = array<i64: 64, 1>}, {pipeline_mode = #tpu.pipeline_mode<synchronous>, transform_indices = @transform_5, window_bounds = array<i64: 64, 64>}, {pipeline_mode = #tpu.pipeline_mode<synchronous>, transform_indices = @transform_6, window_bounds = array<i64: 64, 1>}, {pipeline_mode = #tpu.pipeline_mode<synchronous>, transform_indices = @transform_7, window_bounds = array<i64: 2, 64>}, {pipeline_mode = #tpu.pipeline_mode<synchronous>, transform_indices = @transform_8, window_bounds = array<i64: 2, 1>}, {transform_indices = @transform_9, window_bounds = array<i64: 2, 128>}]} {
    %c0 = arith.constant 0 : index
    %c0_0 = arith.constant 0 : index
    %0 = vector.load %arg1[%c0, %c0_0] : memref<1x128xf32, #tpu.memory_space<vmem>>, vector<1x128xf32>
    %c0_1 = arith.constant 0 : index
    %c0_2 = arith.constant 0 : index
    %1 = vector.load %arg2[%c0_1, %c0_2] : memref<64x1xf32, #tpu.memory_space<vmem>>, vector<64x1xf32>
    %2 = vector.broadcast %1 : vector<64x1xf32> to vector<64x128xf32>
    %3 = vector.broadcast %0 : vector<1x128xf32> to vector<64x128xf32>
    %4 = arith.mulf %2, %3 : vector<64x128xf32>
    %c0_3 = arith.constant 0 : index
    %c0_4 = arith.constant 0 : index
    %5 = vector.load %arg3[%c0_3, %c0_4] : memref<64x1xf32, #tpu.memory_space<vmem>>, vector<64x1xf32>
    %6 = vector.broadcast %5 : vector<64x1xf32> to vector<64x128xf32>
    %7 = arith.addf %4, %6 : vector<64x128xf32>
    %8 = math.tanh %7 : vector<64x128xf32>
    %c0_5 = arith.constant 0 : index
    %c0_6 = arith.constant 0 : index
    %9 = vector.load %arg4[%c0_5, %c0_6] : memref<64x64xf32, #tpu.memory_space<vmem>>, vector<64x64xf32>
    %cst = arith.constant dense<0.000000e+00> : vector<64x128xf32>
    %10 = tpu.matmul %9, %8, %cst {dimension_numbers = #tpu.dot_dimension_numbers<[1], [0], [0], [1], [0, 0, 1, 1], [], []>} : vector<64x64xf32>, vector<64x128xf32>, vector<64x128xf32> -> vector<64x128xf32>
    %c0_7 = arith.constant 0 : index
    %c0_8 = arith.constant 0 : index
    %11 = vector.load %arg5[%c0_7, %c0_8] : memref<64x1xf32, #tpu.memory_space<vmem>>, vector<64x1xf32>
    %12 = vector.broadcast %11 : vector<64x1xf32> to vector<64x128xf32>
    %13 = arith.addf %10, %12 : vector<64x128xf32>
    %14 = math.tanh %13 : vector<64x128xf32>
    %c0_9 = arith.constant 0 : index
    %c0_10 = arith.constant 0 : index
    %15 = vector.load %arg6[%c0_9, %c0_10] : memref<64x64xf32, #tpu.memory_space<vmem>>, vector<64x64xf32>
    %cst_11 = arith.constant dense<0.000000e+00> : vector<64x128xf32>
    %16 = tpu.matmul %15, %14, %cst_11 {dimension_numbers = #tpu.dot_dimension_numbers<[1], [0], [0], [1], [0, 0, 1, 1], [], []>} : vector<64x64xf32>, vector<64x128xf32>, vector<64x128xf32> -> vector<64x128xf32>
    %c0_12 = arith.constant 0 : index
    %c0_13 = arith.constant 0 : index
    %17 = vector.load %arg7[%c0_12, %c0_13] : memref<64x1xf32, #tpu.memory_space<vmem>>, vector<64x1xf32>
    %18 = vector.broadcast %17 : vector<64x1xf32> to vector<64x128xf32>
    %19 = arith.addf %16, %18 : vector<64x128xf32>
    %20 = math.tanh %19 : vector<64x128xf32>
    %c0_14 = arith.constant 0 : index
    %c0_15 = arith.constant 0 : index
    %21 = vector.load %arg8[%c0_14, %c0_15] : memref<2x64xf32, #tpu.memory_space<vmem>>, vector<2x64xf32>
    %cst_16 = arith.constant dense<0.000000e+00> : vector<2x128xf32>
    %22 = tpu.matmul %21, %20, %cst_16 {dimension_numbers = #tpu.dot_dimension_numbers<[1], [0], [0], [1], [0, 0, 1, 1], [], []>} : vector<2x64xf32>, vector<64x128xf32>, vector<2x128xf32> -> vector<2x128xf32>
    %c0_17 = arith.constant 0 : index
    %c0_18 = arith.constant 0 : index
    %23 = vector.load %arg9[%c0_17, %c0_18] : memref<2x1xf32, #tpu.memory_space<vmem>>, vector<2x1xf32>
    %24 = vector.broadcast %23 : vector<2x1xf32> to vector<2x128xf32>
    %25 = arith.addf %22, %24 : vector<2x128xf32>
    %c0_19 = arith.constant 0 : index
    %c0_20 = arith.constant 0 : index
    %26 = vector.load %arg10[%c0_19, %c0_20] : memref<2x128xf32, #tpu.memory_space<vmem>>, vector<2x128xf32>
    tpu.vector_store %arg10[%c0_19, %c0_20], %25 {strides = array<i32>} : memref<2x128xf32, #tpu.memory_space<vmem>>, vector<2x128xf32>,
    return
  }
  func.func @transform_0(%arg0: i32) -> (i32, i32) {
    %c0_i32 = arith.constant 0 : i32
    %c0_i32_0 = arith.constant 0 : i32
    return %c0_i32, %arg0 : i32, i32
  }
  func.func @transform_1(%arg0: i32) -> (i32, i32) {
    %c0_i32 = arith.constant 0 : i32
    %c0_i32_0 = arith.constant 0 : i32
    %c0_i32_1 = arith.constant 0 : i32
    return %c0_i32, %c0_i32_0 : i32, i32
  }
  func.func @transform_2(%arg0: i32) -> (i32, i32) {
    %c0_i32 = arith.constant 0 : i32
    %c0_i32_0 = arith.constant 0 : i32
    %c0_i32_1 = arith.constant 0 : i32
    return %c0_i32, %c0_i32_0 : i32, i32
  }
  func.func @transform_3(%arg0: i32) -> (i32, i32) {
    %c0_i32 = arith.constant 0 : i32
    %c0_i32_0 = arith.constant 0 : i32
    %c0_i32_1 = arith.constant 0 : i32
    return %c0_i32, %c0_i32_0 : i32, i32
  }
  func.func @transform_4(%arg0: i32) -> (i32, i32) {
    %c0_i32 = arith.constant 0 : i32
    %c0_i32_0 = arith.constant 0 : i32
    %c0_i32_1 = arith.constant 0 : i32
    return %c0_i32, %c0_i32_0 : i32, i32
  }
  func.func @transform_5(%arg0: i32) -> (i32, i32) {
    %c0_i32 = arith.constant 0 : i32
    %c0_i32_0 = arith.constant 0 : i32
    %c0_i32_1 = arith.constant 0 : i32
    return %c0_i32, %c0_i32_0 : i32, i32
  }
  func.func @transform_6(%arg0: i32) -> (i32, i32) {
    %c0_i32 = arith.constant 0 : i32
    %c0_i32_0 = arith.constant 0 : i32
    %c0_i32_1 = arith.constant 0 : i32
    return %c0_i32, %c0_i32_0 : i32, i32
  }
  func.func @transform_7(%arg0: i32) -> (i32, i32) {
    %c0_i32 = arith.constant 0 : i32
    %c0_i32_0 = arith.constant 0 : i32
    %c0_i32_1 = arith.constant 0 : i32
    return %c0_i32, %c0_i32_0 : i32, i32
  }
  func.func @transform_8(%arg0: i32) -> (i32, i32) {
    %c0_i32 = arith.constant 0 : i32
    %c0_i32_0 = arith.constant 0 : i32
    %c0_i32_1 = arith.constant 0 : i32
    return %c0_i32, %c0_i32_0 : i32, i32
  }
  func.func @transform_9(%arg0: i32) -> (i32, i32) {
    %c0_i32 = arith.constant 0 : i32
    %c0_i32_0 = arith.constant 0 : i32
    return %c0_i32, %arg0 : i32, i32
  }
}

</mosaic_0001>

<llo_original>
// kernel: tpu_custom_call.1
$region0: #{tpu_custom_call.1}
  #allocation0 [shape = 'u32[]', space=smem, size = 0x4, offset = 0x4, fixed_abs, tag = 'smem constant byte address 0x4 - core index']
  #allocation1 [shape = 'u32[144,128]{1,0:T(1,128)}', space=vmem, size = 0x12000, scoped, tag = 'internal scratch']
  %s0 = inlined_call_operand.hbm [shape: f32[1,128], index: 0, kind: input, shape index: {}]
  %s1 = inlined_call_operand.hbm [shape: f32[64,1], index: 1, kind: input, shape index: {}]
  %s2 = inlined_call_operand.hbm [shape: f32[64,1], index: 2, kind: input, shape index: {}]
  %s3 = inlined_call_operand.hbm [shape: f32[64,64], index: 3, kind: input, shape index: {}]
  %s4 = inlined_call_operand.hbm [shape: f32[64,1], index: 4, kind: input, shape index: {}]
  %s5 = inlined_call_operand.hbm [shape: f32[64,64], index: 5, kind: input, shape index: {}]
  %s6 = inlined_call_operand.hbm [shape: f32[64,1], index: 6, kind: input, shape index: {}]
  %s7 = inlined_call_operand.hbm [shape: f32[2,64], index: 7, kind: input, shape index: {}]
  %s8 = inlined_call_operand.hbm [shape: f32[2,1], index: 8, kind: input, shape index: {}]
  %s9 = inlined_call_operand.hbm [shape: f32[2,128], index: 9, kind: output, shape index: {}]
  %s10 = sld [smem:[#allocation0]]
  $region82: #{tpu_custom_call.1} parent=0
    _
  %s12 = ssub.s32 1, %s10
  %s13 = scalar_select 0, %s12, %s10
  $region1: #{tpu_custom_call.1} parent=0
    #allocation2 [shape = 'u8[512]{0}', space=vmem, size = 0x400, scoped, tag = 'input window, operand 0, single buffered']
    #allocation3 [shape = 's32[1]{0}', space=sflag, size = 0x4, scoped, tag = 'scoped memory for tpu_custom_call.1']
    #allocation4 [shape = 's32[1]{0}', space=sflag, size = 0x4, scoped, tag = 'scoped memory for tpu_custom_call.1']
    #allocation5 [shape = 'u8[32768]{0}', space=vmem, size = 0x8000, scoped, tag = 'input window, operand 1, single buffered']
    #allocation6 [shape = 's32[1]{0}', space=sflag, size = 0x4, scoped, tag = 'scoped memory for tpu_custom_call.1']
    #allocation7 [shape = 'u8[32768]{0}', space=vmem, size = 0x8000, scoped, tag = 'input window, operand 2, single buffered']
    #allocation8 [shape = 'u8[32768]{0}', space=vmem, size = 0x8000, scoped, tag = 'input window, operand 3, single buffered']
    #allocation9 [shape = 's32[1]{0}', space=sflag, size = 0x4, scoped, tag = 'scoped memory for tpu_custom_call.1']
    #allocation10 [shape = 'u8[32768]{0}', space=vmem, size = 0x8000, scoped, tag = 'input window, operand 4, single buffered']
    #allocation11 [shape = 'u8[32768]{0}', space=vmem, size = 0x8000, scoped, tag = 'input window, operand 5, single buffered']
    #allocation12 [shape = 's32[1]{0}', space=sflag, size = 0x4, scoped, tag = 'scoped memory for tpu_custom_call.1']
    #allocation13 [shape = 'u8[32768]{0}', space=vmem, size = 0x8000, scoped, tag = 'input window, operand 6, single buffered']
    #allocation14 [shape = 'u8[1024]{0}', space=vmem, size = 0x400, scoped, tag = 'input window, operand 7, single buffered']
    #allocation15 [shape = 's32[1]{0}', space=sflag, size = 0x4, scoped, tag = 'scoped memory for tpu_custom_call.1']
    #allocation16 [shape = 'u8[1024]{0}', space=vmem, size = 0x400, scoped, tag = 'input window, operand 8, single buffered']
    #allocation17 [shape = 'u8[1024]{0}', space=vmem, size = 0x400, scoped, tag = 'output window, operand 0, single buffered']
    %14 = vsyncpa [#allocation3], 0
    %15 = vsyncpa [#allocation6], 0
    %16 = vsyncpa [#allocation9], 0
    %17 = vsyncpa [#allocation12], 0
    %18 = vsyncpa [#allocation15], 0
    %19 = vsyncpa [#allocation4], 0
    // Predicated region
    $region2: #{tpu_custom_call.1} parent=1 // pred_check
      _
    $region3: #{tpu_custom_call.1} parent=1 // pred_check_branch
      %21 = sbr.rel (0) target = $region5
    $region4: #{tpu_custom_call.1} parent=1 // pred_region
      %s23 = ssub.s32 16, 16
      %24 = vsyncadd [#allocation3], %s23
      %s26 = sshll.u32 [#allocation2], 4
      %s27 = int_to_ptr.vmem [resolvable:$true] %s26
      %29 = dma.hbm_to_vmem [thread:$0]  %s0, 16, %s27, [#allocation3]
    $region5: #{tpu_custom_call.1} parent=1 // pred_fallthru
      _
    // Predicated region
    $region6: #{tpu_custom_call.1} parent=1 // pred_check
      _
    $region7: #{tpu_custom_call.1} parent=1 // pred_check_branch
      %31 = sbr.rel (0) target = $region9
    $region8: #{tpu_custom_call.1} parent=1 // pred_region
      %s33 = ssub.s32 1024, 1024
      %34 = vsyncadd [#allocation6], %s33
      %s35 = sshll.u32 [#allocation5], 4
      %s36 = int_to_ptr.vmem [resolvable:$true] %s35
      %41 = dma.hbm_to_vmem [thread:$0]  %s1, 1024, %s36, [#allocation6], 128, 128, 8
    $region9: #{tpu_custom_call.1} parent=1 // pred_fallthru
      _
    // Predicated region
    $region10: #{tpu_custom_call.1} parent=1 // pred_check
      _
    $region11: #{tpu_custom_call.1} parent=1 // pred_check_branch
      %43 = sbr.rel (0) target = $region13
    $region12: #{tpu_custom_call.1} parent=1 // pred_region
      %s45 = ssub.s32 1024, 1024
      %46 = vsyncadd [#allocation6], %s45
      %s47 = sshll.u32 [#allocation7], 4
      %s48 = int_to_ptr.vmem [resolvable:$true] %s47
      %53 = dma.hbm_to_vmem [thread:$0]  %s2, 1024, %s48, [#allocation6], 128, 128, 8
    $region13: #{tpu_custom_call.1} parent=1 // pred_fallthru
      _
    // Predicated region
    $region14: #{tpu_custom_call.1} parent=1 // pred_check
      _
    $region15: #{tpu_custom_call.1} parent=1 // pred_check_branch
      %55 = sbr.rel (0) target = $region17
    $region16: #{tpu_custom_call.1} parent=1 // pred_region
      %s57 = ssub.s32 1024, 1024
      %58 = vsyncadd [#allocation9], %s57
      %s59 = sshll.u32 [#allocation8], 4
      %s60 = int_to_ptr.vmem [resolvable:$true] %s59
      %65 = dma.hbm_to_vmem [thread:$0]  %s3, 1024, %s60, [#allocation9], 128, 128, 8
    $region17: #{tpu_custom_call.1} parent=1 // pred_fallthru
      _
    // Predicated region
    $region18: #{tpu_custom_call.1} parent=1 // pred_check
      _
    $region19: #{tpu_custom_call.1} parent=1 // pred_check_branch
      %67 = sbr.rel (0) target = $region21
    $region20: #{tpu_custom_call.1} parent=1 // pred_region
      %s69 = ssub.s32 1024, 1024
      %70 = vsyncadd [#allocation9], %s69
      %s71 = sshll.u32 [#allocation10], 4
      %s72 = int_to_ptr.vmem [resolvable:$true] %s71
      %77 = dma.hbm_to_vmem [thread:$0]  %s4, 1024, %s72, [#allocation9], 128, 128, 8
    $region21: #{tpu_custom_call.1} parent=1 // pred_fallthru
      _
    // Predicated region
    $region22: #{tpu_custom_call.1} parent=1 // pred_check
      _
    $region23: #{tpu_custom_call.1} parent=1 // pred_check_branch
      %79 = sbr.rel (0) target = $region25
    $region24: #{tpu_custom_call.1} parent=1 // pred_region
      %s81 = ssub.s32 1024, 1024
      %82 = vsyncadd [#allocation12], %s81
      %s83 = sshll.u32 [#allocation11], 4
      %s84 = int_to_ptr.vmem [resolvable:$true] %s83
      %89 = dma.hbm_to_vmem [thread:$0]  %s5, 1024, %s84, [#allocation12], 128, 128, 8
    $region25: #{tpu_custom_call.1} parent=1 // pred_fallthru
      _
    // Predicated region
    $region26: #{tpu_custom_call.1} parent=1 // pred_check
      _
    $region27: #{tpu_custom_call.1} parent=1 // pred_check_branch
      %91 = sbr.rel (0) target = $region29
    $region28: #{tpu_custom_call.1} parent=1 // pred_region
      %s93 = ssub.s32 1024, 1024
      %94 = vsyncadd [#allocation12], %s93
      %s95 = sshll.u32 [#allocation13], 4
      %s96 = int_to_ptr.vmem [resolvable:$true] %s95
      %101 = dma.hbm_to_vmem [thread:$0]  %s6, 1024, %s96, [#allocation12], 128, 128, 8
    $region29: #{tpu_custom_call.1} parent=1 // pred_fallthru
      _
    // Predicated region
    $region30: #{tpu_custom_call.1} parent=1 // pred_check
      _
    $region31: #{tpu_custom_call.1} parent=1 // pred_check_branch
      %103 = sbr.rel (0) target = $region33
    $region32: #{tpu_custom_call.1} parent=1 // pred_region
      %s105 = ssub.s32 32, 32
      %106 = vsyncadd [#allocation15], %s105
      %s108 = sshll.u32 [#allocation14], 4
      %s109 = int_to_ptr.vmem [resolvable:$true] %s108
      %111 = dma.hbm_to_vmem [thread:$0]  %s7, 32, %s109, [#allocation15]
    $region33: #{tpu_custom_call.1} parent=1 // pred_fallthru
      _
    // Predicated region
    $region34: #{tpu_custom_call.1} parent=1 // pred_check
      _
    $region35: #{tpu_custom_call.1} parent=1 // pred_check_branch
      %113 = sbr.rel (0) target = $region37
    $region36: #{tpu_custom_call.1} parent=1 // pred_region
      %s115 = ssub.s32 32, 32
      %116 = vsyncadd [#allocation15], %s115
      %s118 = sshll.u32 [#allocation16], 4
      %s119 = int_to_ptr.vmem [resolvable:$true] %s118
      %121 = dma.hbm_to_vmem [thread:$0]  %s8, 32, %s119, [#allocation15]
    $region37: #{tpu_custom_call.1} parent=1 // pred_fallthru
      _
    // Predicated region
    $region38: #{tpu_custom_call.1} parent=1 // pred_check
      _
    $region39: #{tpu_custom_call.1} parent=1 // pred_check_branch
      %123 = sbr.rel (0) target = $region41
    $region40: #{tpu_custom_call.1} parent=1 // pred_region
      %124 = dma.done [#allocation3], 16
    $region41: #{tpu_custom_call.1} parent=1 // pred_fallthru
      _
    // Predicated region
    $region42: #{tpu_custom_call.1} parent=1 // pred_check
      _
    $region43: #{tpu_custom_call.1} parent=1 // pred_check_branch
      %126 = sbr.rel (0) target = $region45
    $region44: #{tpu_custom_call.1} parent=1 // pred_region
      %127 = dma.done [#allocation6], 1024
    $region45: #{tpu_custom_call.1} parent=1 // pred_fallthru
      _
    // Predicated region
    $region46: #{tpu_custom_call.1} parent=1 // pred_check
      _
    $region47: #{tpu_custom_call.1} parent=1 // pred_check_branch
      %129 = sbr.rel (0) target = $region49
    $region48: #{tpu_custom_call.1} parent=1 // pred_region
      %130 = dma.done [#allocation6], 1024
    $region49: #{tpu_custom_call.1} parent=1 // pred_fallthru
      _
    // Predicated region
    $region50: #{tpu_custom_call.1} parent=1 // pred_check
      _
    $region51: #{tpu_custom_call.1} parent=1 // pred_check_branch
      %132 = sbr.rel (0) target = $region53
    $region52: #{tpu_custom_call.1} parent=1 // pred_region
      %133 = dma.done [#allocation9], 1024
    $region53: #{tpu_custom_call.1} parent=1 // pred_fallthru
      _
    // Predicated region
    $region54: #{tpu_custom_call.1} parent=1 // pred_check
      _
    $region55: #{tpu_custom_call.1} parent=1 // pred_check_branch
      %135 = sbr.rel (0) target = $region57
    $region56: #{tpu_custom_call.1} parent=1 // pred_region
      %136 = dma.done [#allocation9], 1024
    $region57: #{tpu_custom_call.1} parent=1 // pred_fallthru
      _
    // Predicated region
    $region58: #{tpu_custom_call.1} parent=1 // pred_check
      _
    $region59: #{tpu_custom_call.1} parent=1 // pred_check_branch
      %138 = sbr.rel (0) target = $region61
    $region60: #{tpu_custom_call.1} parent=1 // pred_region
      %139 = dma.done [#allocation12], 1024
    $region61: #{tpu_custom_call.1} parent=1 // pred_fallthru
      _
    // Predicated region
    $region62: #{tpu_custom_call.1} parent=1 // pred_check
      _
    $region63: #{tpu_custom_call.1} parent=1 // pred_check_branch
      %141 = sbr.rel (0) target = $region65
    $region64: #{tpu_custom_call.1} parent=1 // pred_region
      %142 = dma.done [#allocation12], 1024
    $region65: #{tpu_custom_call.1} parent=1 // pred_fallthru
      _
    // Predicated region
    $region66: #{tpu_custom_call.1} parent=1 // pred_check
      _
    $region67: #{tpu_custom_call.1} parent=1 // pred_check_branch
      %144 = sbr.rel (0) target = $region69
    $region68: #{tpu_custom_call.1} parent=1 // pred_region
      %145 = dma.done [#allocation15], 32
    $region69: #{tpu_custom_call.1} parent=1 // pred_fallthru
      _
    // Predicated region
    $region70: #{tpu_custom_call.1} parent=1 // pred_check
      _
    $region71: #{tpu_custom_call.1} parent=1 // pred_check_branch
      %147 = sbr.rel (0) target = $region73
    $region72: #{tpu_custom_call.1} parent=1 // pred_region
      %148 = dma.done [#allocation15], 32
    $region73: #{tpu_custom_call.1} parent=1 // pred_fallthru
      _
    %v149 = vld [vmem:[#allocation2] sm:$0x1]
    %v150 = vld [vmem:[#allocation5] sm:$0xff]
    %v151 = vld [vmem:[#allocation5 + $0x8] sm:$0xff]
    %v152 = vld [vmem:[#allocation5 + $0x10] sm:$0xff]
    %v153 = vld [vmem:[#allocation5 + $0x18] sm:$0xff]
    %v154 = vld [vmem:[#allocation5 + $0x20] sm:$0xff]
    %v155 = vld [vmem:[#allocation5 + $0x28] sm:$0xff]
    %v156 = vld [vmem:[#allocation5 + $0x30] sm:$0xff]
    %v157 = vld [vmem:[#allocation5 + $0x38] sm:$0xff]
    %159 = vset.pattern.permute.xlu0 0
    %160 = vperm.xlu0 %159, %v150
    %v161 = vpop.permute.xlu0 %160
    %164 = vset.pattern.permute.xlu0 0
    %165 = vperm.xlu0 %164, %v151
    %v166 = vpop.permute.xlu0 %165
    %169 = vset.pattern.permute.xlu0 0
    %170 = vperm.xlu0 %169, %v152
    %v171 = vpop.permute.xlu0 %170
    %174 = vset.pattern.permute.xlu0 0
    %175 = vperm.xlu0 %174, %v153
    %v176 = vpop.permute.xlu0 %175
    %179 = vset.pattern.permute.xlu0 0
    %180 = vperm.xlu0 %179, %v154
    %v181 = vpop.permute.xlu0 %180
    %184 = vset.pattern.permute.xlu0 0
    %185 = vperm.xlu0 %184, %v155
    %v186 = vpop.permute.xlu0 %185
    %189 = vset.pattern.permute.xlu0 0
    %190 = vperm.xlu0 %189, %v156
    %v191 = vpop.permute.xlu0 %190
    %194 = vset.pattern.permute.xlu0 0
    %195 = vperm.xlu0 %194, %v157
    %v196 = vpop.permute.xlu0 %195
    %v199 = vlaneseq
    %v200 = vshrl.u32 %v199, 7
    %v201 = vsub.s32 0, %v200
    %v202 = vrot.slane %v149, %v201
    %v204 = vmul.f32 %v161, %v202
    %v205 = vmul.f32 %v166, %v202
    %v206 = vmul.f32 %v171, %v202
    %v207 = vmul.f32 %v176, %v202
    %v208 = vmul.f32 %v181, %v202
    %v209 = vmul.f32 %v186, %v202
    %v210 = vmul.f32 %v191, %v202
    %v211 = vmul.f32 %v196, %v202
    %v212 = vld [vmem:[#allocation7] sm:$0xff]
    %v213 = vld [vmem:[#allocation7 + $0x8] sm:$0xff]
    %v214 = vld [vmem:[#allocation7 + $0x10] sm:$0xff]
    %v215 = vld [vmem:[#allocation7 + $0x18] sm:$0xff]
    %v216 = vld [vmem:[#allocation7 + $0x20] sm:$0xff]
    %v217 = vld [vmem:[#allocation7 + $0x28] sm:$0xff]
    %v218 = vld [vmem:[#allocation7 + $0x30] sm:$0xff]
    %v219 = vld [vmem:[#allocation7 + $0x38] sm:$0xff]
    %221 = vset.pattern.permute.xlu0 0
    %222 = vperm.xlu0 %221, %v212
    %v223 = vpop.permute.xlu0 %222
    %226 = vset.pattern.permute.xlu0 0
    %227 = vperm.xlu0 %226, %v213
    %v228 = vpop.permute.xlu0 %227
    %231 = vset.pattern.permute.xlu0 0
    %232 = vperm.xlu0 %231, %v214
    %v233 = vpop.permute.xlu0 %232
    %236 = vset.pattern.permute.xlu0 0
    %237 = vperm.xlu0 %236, %v215
    %v238 = vpop.permute.xlu0 %237
    %241 = vset.pattern.permute.xlu0 0
    %242 = vperm.xlu0 %241, %v216
    %v243 = vpop.permute.xlu0 %242
    %246 = vset.pattern.permute.xlu0 0
    %247 = vperm.xlu0 %246, %v217
    %v248 = vpop.permute.xlu0 %247
    %251 = vset.pattern.permute.xlu0 0
    %252 = vperm.xlu0 %251, %v218
    %v253 = vpop.permute.xlu0 %252
    %256 = vset.pattern.permute.xlu0 0
    %257 = vperm.xlu0 %256, %v219
    %v258 = vpop.permute.xlu0 %257
    %v260 = vadd.f32 %v204, %v223
    %v261 = vadd.f32 %v205, %v228
    %v262 = vadd.f32 %v206, %v233
    %v263 = vadd.f32 %v207, %v238
    %v264 = vadd.f32 %v208, %v243
    %v265 = vadd.f32 %v209, %v248
    %v266 = vadd.f32 %v210, %v253
    %v267 = vadd.f32 %v211, %v258
    %v268 = vtanh.pop %v260
    %v269 = vtanh.pop %v261
    %v270 = vtanh.pop %v262
    %v271 = vtanh.pop %v263
    %v272 = vtanh.pop %v264
    %v273 = vtanh.pop %v265
    %v274 = vtanh.pop %v266
    %v275 = vtanh.pop %v267
    %v276 = vld [vmem:[#allocation8] sm:$0xff]
    %v277 = vld [vmem:[#allocation8 + $0x8] sm:$0xff]
    %v278 = vld [vmem:[#allocation8 + $0x10] sm:$0xff]
    %v279 = vld [vmem:[#allocation8 + $0x18] sm:$0xff]
    %v280 = vld [vmem:[#allocation8 + $0x20] sm:$0xff]
    %v281 = vld [vmem:[#allocation8 + $0x28] sm:$0xff]
    %v282 = vld [vmem:[#allocation8 + $0x30] sm:$0xff]
    %v283 = vld [vmem:[#allocation8 + $0x38] sm:$0xff]
    %v284 = vld [vmem:[#allocation10] sm:$0xff]
    %v285 = vld [vmem:[#allocation10 + $0x8] sm:$0xff]
    %v286 = vld [vmem:[#allocation10 + $0x10] sm:$0xff]
    %v287 = vld [vmem:[#allocation10 + $0x18] sm:$0xff]
    %v288 = vld [vmem:[#allocation10 + $0x20] sm:$0xff]
    %v289 = vld [vmem:[#allocation10 + $0x28] sm:$0xff]
    %v290 = vld [vmem:[#allocation10 + $0x30] sm:$0xff]
    %v291 = vld [vmem:[#allocation10 + $0x38] sm:$0xff]
    %293 = vset.pattern.permute.xlu0 0
    %294 = vperm.xlu0 %293, %v284
    %v295 = vpop.permute.xlu0 %294
    %298 = vset.pattern.permute.xlu0 0
    %299 = vperm.xlu0 %298, %v285
    %v300 = vpop.permute.xlu0 %299
    %303 = vset.pattern.permute.xlu0 0
    %304 = vperm.xlu0 %303, %v286
    %v305 = vpop.permute.xlu0 %304
    %308 = vset.pattern.permute.xlu0 0
    %309 = vperm.xlu0 %308, %v287
    %v310 = vpop.permute.xlu0 %309
    %313 = vset.pattern.permute.xlu0 0
    %314 = vperm.xlu0 %313, %v288
    %v315 = vpop.permute.xlu0 %314
    %318 = vset.pattern.permute.xlu0 0
    %319 = vperm.xlu0 %318, %v289
    %v320 = vpop.permute.xlu0 %319
    %323 = vset.pattern.permute.xlu0 0
    %324 = vperm.xlu0 %323, %v290
    %v325 = vpop.permute.xlu0 %324
    %328 = vset.pattern.permute.xlu0 0
    %329 = vperm.xlu0 %328, %v291
    %v330 = vpop.permute.xlu0 %329
    %vm332 = vcmask 523264
    %v334 = vsel %vm332, %v276, 0
    %v337 = vsel %vm332, %v277, 0
    %v340 = vsel %vm332, %v278, 0
    %v343 = vsel %vm332, %v279, 0
    %v346 = vsel %vm332, %v280, 0
    %v349 = vsel %vm332, %v281, 0
    %v352 = vsel %vm332, %v282, 0
    %v355 = vsel %vm332, %v283, 0
    %357 = vmatprep.subr.mxu0 0.0
    %358 = vmatpush1.msra.mxu0 %v268
    %359 = vmatprep.subr.mxu0 0.0
    %360 = vmatpush1.msra.mxu0 %v269
    %361 = vmatprep.subr.mxu0 0.0
    %362 = vmatpush1.msra.mxu0 %v270
    %363 = vmatprep.subr.mxu0 0.0
    %364 = vmatpush1.msra.mxu0 %v271
    %365 = vmatprep.subr.mxu0 0.0
    %366 = vmatpush1.msra.mxu0 %v272
    %367 = vmatprep.subr.mxu0 0.0
    %368 = vmatpush1.msra.mxu0 %v273
    %369 = vmatprep.subr.mxu0 0.0
    %370 = vmatpush1.msra.mxu0 %v274
    %371 = vmatprep.subr.mxu0 0.0
    %372 = vmatpush1.msra.mxu0 %v275
    %373 = vmatprep.subr.mxu0 0.0
    %374 = vmatpush1.msra.mxu0 0.0
    %375 = vmatprep.subr.mxu0 0.0
    %376 = vmatpush1.msra.mxu0 0.0
    %377 = vmatprep.subr.mxu0 0.0
    %378 = vmatpush1.msra.mxu0 0.0
    %379 = vmatprep.subr.mxu0 0.0
    %380 = vmatpush1.msra.mxu0 0.0
    %381 = vmatprep.subr.mxu0 0.0
    %382 = vmatpush1.msra.mxu0 0.0
    %383 = vmatprep.subr.mxu0 0.0
    %384 = vmatpush1.msra.mxu0 0.0
    %385 = vmatprep.subr.mxu0 0.0
    %386 = vmatpush1.msra.mxu0 0.0
    %387 = vmatprep.subr.mxu0 0.0
    %388 = vmatpush1.msra.mxu0 0.0
    %389 = vmatprep.subr.mxu0 0.0
    %390 = vmatpush1.msra.mxu0 0.0
    %391 = vmatprep.subr.mxu0 0.0
    %392 = vmatpush1.msra.mxu0 0.0
    %393 = vmatprep.subr.mxu0 0.0
    %394 = vmatpush1.msra.mxu0 0.0
    %395 = vmatprep.subr.mxu0 0.0
    %396 = vmatpush1.msra.mxu0 0.0
    %397 = vmatprep.subr.mxu0 0.0
    %398 = vmatpush1.msra.mxu0 0.0
    %399 = vmatprep.subr.mxu0 0.0
    %400 = vmatpush1.msra.mxu0 0.0
    %401 = vmatprep.subr.mxu0 0.0
    %402 = vmatpush1.msra.mxu0 0.0
    %403 = vmatprep.subr.mxu0 0.0
    %404 = vmatpush1.msra.mxu0 0.0
    %405 = vmatprep.subr.mxu0 0.0
    %406 = vmatpush1.msra.mxu0 0.0
    %407 = vmatprep.subr.mxu0 0.0
    %408 = vmatpush1.msra.mxu0 0.0
    %409 = vmatprep.subr.mxu0 0.0
    %410 = vmatpush1.msra.mxu0 0.0
    %411 = vmatprep.subr.mxu0 0.0
    %412 = vmatpush1.msra.mxu0 0.0
    %413 = vmatprep.subr.mxu0 0.0
    %414 = vmatpush1.msra.mxu0 0.0
    %415 = vmatprep.subr.mxu0 0.0
    %416 = vmatpush1.msra.mxu0 0.0
    %417 = vmatprep.subr.mxu0 0.0
    %418 = vmatpush1.msra.mxu0 0.0
    %419 = vmatprep.subr.mxu0 0.0
    %420 = vmatpush1.msra.mxu0 0.0
    %421 = vmatprep.mubr.f32.mxu0 0.0
    %422 = vmatmul.mubr.f32.gmra.mrb[0].mxu0 %v334
    %v423 = vpop.f32.mrb[0].mxu0
    %v424 = vadd.f32 %v295, %v423
    %v425 = vpop.f32.mrb[0].mxu0
    %426 = vmatprep.mubr.f32.mxu0 0.0
    %427 = vmatmul.mubr.f32.gmra.mrb[0].mxu0 %v337
    %v428 = vpop.f32.mrb[0].mxu0
    %v429 = vadd.f32 %v300, %v428
    %v430 = vpop.f32.mrb[0].mxu0
    %431 = vmatprep.mubr.f32.mxu0 0.0
    %432 = vmatmul.mubr.f32.gmra.mrb[0].mxu0 %v340
    %v433 = vpop.f32.mrb[0].mxu0
    %v434 = vadd.f32 %v305, %v433
    %v435 = vpop.f32.mrb[0].mxu0
    %436 = vmatprep.mubr.f32.mxu0 0.0
    %437 = vmatmul.mubr.f32.gmra.mrb[0].mxu0 %v343
    %v438 = vpop.f32.mrb[0].mxu0
    %v439 = vadd.f32 %v310, %v438
    %v440 = vpop.f32.mrb[0].mxu0
    %441 = vmatprep.mubr.f32.mxu0 0.0
    %442 = vmatmul.mubr.f32.gmra.mrb[0].mxu0 %v346
    %v443 = vpop.f32.mrb[0].mxu0
    %v444 = vadd.f32 %v315, %v443
    %v445 = vpop.f32.mrb[0].mxu0
    %446 = vmatprep.mubr.f32.mxu0 0.0
    %447 = vmatmul.mubr.f32.gmra.mrb[0].mxu0 %v349
    %v448 = vpop.f32.mrb[0].mxu0
    %v449 = vadd.f32 %v320, %v448
    %v450 = vpop.f32.mrb[0].mxu0
    %451 = vmatprep.mubr.f32.mxu0 0.0
    %452 = vmatmul.mubr.f32.gmra.mrb[0].mxu0 %v352
    %v453 = vpop.f32.mrb[0].mxu0
    %v454 = vadd.f32 %v325, %v453
    %v455 = vpop.f32.mrb[0].mxu0
    %456 = vmatprep.mubr.f32.mxu0 0.0
    %457 = vmatmul.mubr.f32.gmra.mrb[0].mxu0 %v355
    %v458 = vpop.f32.mrb[0].mxu0
    %v459 = vadd.f32 %v330, %v458
    %v460 = vpop.f32.mrb[0].mxu0
    %461 = vdwg.mxu0
    %v462 = vtanh.pop %v424
    %v463 = vtanh.pop %v429
    %v464 = vtanh.pop %v434
    %v465 = vtanh.pop %v439
    %v466 = vtanh.pop %v444
    %v467 = vtanh.pop %v449
    %v468 = vtanh.pop %v454
    %v469 = vtanh.pop %v459
    %v470 = vld [vmem:[#allocation11] sm:$0xff]
    %v471 = vld [vmem:[#allocation11 + $0x8] sm:$0xff]
    %v472 = vld [vmem:[#allocation11 + $0x10] sm:$0xff]
    %v473 = vld [vmem:[#allocation11 + $0x18] sm:$0xff]
    %v474 = vld [vmem:[#allocation11 + $0x20] sm:$0xff]
    %v475 = vld [vmem:[#allocation11 + $0x28] sm:$0xff]
    %v476 = vld [vmem:[#allocation11 + $0x30] sm:$0xff]
    %v477 = vld [vmem:[#allocation11 + $0x38] sm:$0xff]
    %v478 = vld [vmem:[#allocation13] sm:$0xff]
    %v479 = vld [vmem:[#allocation13 + $0x8] sm:$0xff]
    %v480 = vld [vmem:[#allocation13 + $0x10] sm:$0xff]
    %v481 = vld [vmem:[#allocation13 + $0x18] sm:$0xff]
    %v482 = vld [vmem:[#allocation13 + $0x20] sm:$0xff]
    %v483 = vld [vmem:[#allocation13 + $0x28] sm:$0xff]
    %v484 = vld [vmem:[#allocation13 + $0x30] sm:$0xff]
    %v485 = vld [vmem:[#allocation13 + $0x38] sm:$0xff]
    %487 = vset.pattern.permute.xlu0 0
    %488 = vperm.xlu0 %487, %v478
    %v489 = vpop.permute.xlu0 %488
    %492 = vset.pattern.permute.xlu0 0
    %493 = vperm.xlu0 %492, %v479
    %v494 = vpop.permute.xlu0 %493
    %497 = vset.pattern.permute.xlu0 0
    %498 = vperm.xlu0 %497, %v480
    %v499 = vpop.permute.xlu0 %498
    %502 = vset.pattern.permute.xlu0 0
    %503 = vperm.xlu0 %502, %v481
    %v504 = vpop.permute.xlu0 %503
    %507 = vset.pattern.permute.xlu0 0
    %508 = vperm.xlu0 %507, %v482
    %v509 = vpop.permute.xlu0 %508
    %512 = vset.pattern.permute.xlu0 0
    %513 = vperm.xlu0 %512, %v483
    %v514 = vpop.permute.xlu0 %513
    %517 = vset.pattern.permute.xlu0 0
    %518 = vperm.xlu0 %517, %v484
    %v519 = vpop.permute.xlu0 %518
    %522 = vset.pattern.permute.xlu0 0
    %523 = vperm.xlu0 %522, %v485
    %v524 = vpop.permute.xlu0 %523
    %v527 = vsel %vm332, %v470, 0
    %v530 = vsel %vm332, %v471, 0
    %v533 = vsel %vm332, %v472, 0
    %v536 = vsel %vm332, %v473, 0
    %v539 = vsel %vm332, %v474, 0
    %v542 = vsel %vm332, %v475, 0
    %v545 = vsel %vm332, %v476, 0
    %v548 = vsel %vm332, %v477, 0
    %550 = vmatprep.subr.mxu0 0.0
    %551 = vmatpush1.msra.mxu0 %v462
    %552 = vmatprep.subr.mxu0 0.0
    %553 = vmatpush1.msra.mxu0 %v463
    %554 = vmatprep.subr.mxu0 0.0
    %555 = vmatpush1.msra.mxu0 %v464
    %556 = vmatprep.subr.mxu0 0.0
    %557 = vmatpush1.msra.mxu0 %v465
    %558 = vmatprep.subr.mxu0 0.0
    %559 = vmatpush1.msra.mxu0 %v466
    %560 = vmatprep.subr.mxu0 0.0
    %561 = vmatpush1.msra.mxu0 %v467
    %562 = vmatprep.subr.mxu0 0.0
    %563 = vmatpush1.msra.mxu0 %v468
    %564 = vmatprep.subr.mxu0 0.0
    %565 = vmatpush1.msra.mxu0 %v469
    %566 = vmatprep.subr.mxu0 0.0
    %567 = vmatpush1.msra.mxu0 0.0
    %568 = vmatprep.subr.mxu0 0.0
    %569 = vmatpush1.msra.mxu0 0.0
    %570 = vmatprep.subr.mxu0 0.0
    %571 = vmatpush1.msra.mxu0 0.0
    %572 = vmatprep.subr.mxu0 0.0
    %573 = vmatpush1.msra.mxu0 0.0
    %574 = vmatprep.subr.mxu0 0.0
    %575 = vmatpush1.msra.mxu0 0.0
    %576 = vmatprep.subr.mxu0 0.0
    %577 = vmatpush1.msra.mxu0 0.0
    %578 = vmatprep.subr.mxu0 0.0
    %579 = vmatpush1.msra.mxu0 0.0
    %580 = vmatprep.subr.mxu0 0.0
    %581 = vmatpush1.msra.mxu0 0.0
    %582 = vmatprep.subr.mxu0 0.0
    %583 = vmatpush1.msra.mxu0 0.0
    %584 = vmatprep.subr.mxu0 0.0
    %585 = vmatpush1.msra.mxu0 0.0
    %586 = vmatprep.subr.mxu0 0.0
    %587 = vmatpush1.msra.mxu0 0.0
    %588 = vmatprep.subr.mxu0 0.0
    %589 = vmatpush1.msra.mxu0 0.0
    %590 = vmatprep.subr.mxu0 0.0
    %591 = vmatpush1.msra.mxu0 0.0
    %592 = vmatprep.subr.mxu0 0.0
    %593 = vmatpush1.msra.mxu0 0.0
    %594 = vmatprep.subr.mxu0 0.0
    %595 = vmatpush1.msra.mxu0 0.0
    %596 = vmatprep.subr.mxu0 0.0
    %597 = vmatpush1.msra.mxu0 0.0
    %598 = vmatprep.subr.mxu0 0.0
    %599 = vmatpush1.msra.mxu0 0.0
    %600 = vmatprep.subr.mxu0 0.0
    %601 = vmatpush1.msra.mxu0 0.0
    %602 = vmatprep.subr.mxu0 0.0
    %603 = vmatpush1.msra.mxu0 0.0
    %604 = vmatprep.subr.mxu0 0.0
    %605 = vmatpush1.msra.mxu0 0.0
    %606 = vmatprep.subr.mxu0 0.0
    %607 = vmatpush1.msra.mxu0 0.0
    %608 = vmatprep.subr.mxu0 0.0
    %609 = vmatpush1.msra.mxu0 0.0
    %610 = vmatprep.subr.mxu0 0.0
    %611 = vmatpush1.msra.mxu0 0.0
    %612 = vmatprep.subr.mxu0 0.0
    %613 = vmatpush1.msra.mxu0 0.0
    %614 = vmatprep.mubr.f32.mxu0 0.0
    %615 = vmatmul.mubr.f32.gmra.mrb[0].mxu0 %v527
    %v616 = vpop.f32.mrb[0].mxu0
    %v617 = vadd.f32 %v489, %v616
    %v618 = vpop.f32.mrb[0].mxu0
    %619 = vmatprep.mubr.f32.mxu0 0.0
    %620 = vmatmul.mubr.f32.gmra.mrb[0].mxu0 %v530
    %v621 = vpop.f32.mrb[0].mxu0
    %v622 = vadd.f32 %v494, %v621
    %v623 = vpop.f32.mrb[0].mxu0
    %624 = vmatprep.mubr.f32.mxu0 0.0
    %625 = vmatmul.mubr.f32.gmra.mrb[0].mxu0 %v533
    %v626 = vpop.f32.mrb[0].mxu0
    %v627 = vadd.f32 %v499, %v626
    %v628 = vpop.f32.mrb[0].mxu0
    %629 = vmatprep.mubr.f32.mxu0 0.0
    %630 = vmatmul.mubr.f32.gmra.mrb[0].mxu0 %v536
    %v631 = vpop.f32.mrb[0].mxu0
    %v632 = vadd.f32 %v504, %v631
    %v633 = vpop.f32.mrb[0].mxu0
    %634 = vmatprep.mubr.f32.mxu0 0.0
    %635 = vmatmul.mubr.f32.gmra.mrb[0].mxu0 %v539
    %v636 = vpop.f32.mrb[0].mxu0
    %v637 = vadd.f32 %v509, %v636
    %v638 = vpop.f32.mrb[0].mxu0
    %639 = vmatprep.mubr.f32.mxu0 0.0
    %640 = vmatmul.mubr.f32.gmra.mrb[0].mxu0 %v542
    %v641 = vpop.f32.mrb[0].mxu0
    %v642 = vadd.f32 %v514, %v641
    %v643 = vpop.f32.mrb[0].mxu0
    %644 = vmatprep.mubr.f32.mxu0 0.0
    %645 = vmatmul.mubr.f32.gmra.mrb[0].mxu0 %v545
    %v646 = vpop.f32.mrb[0].mxu0
    %v647 = vadd.f32 %v519, %v646
    %v648 = vpop.f32.mrb[0].mxu0
    %649 = vmatprep.mubr.f32.mxu0 0.0
    %650 = vmatmul.mubr.f32.gmra.mrb[0].mxu0 %v548
    %v651 = vpop.f32.mrb[0].mxu0
    %v652 = vadd.f32 %v524, %v651
    %v653 = vpop.f32.mrb[0].mxu0
    %654 = vdwg.mxu0
    %v655 = vtanh.pop %v617
    %v656 = vtanh.pop %v622
    %v657 = vtanh.pop %v627
    %v658 = vtanh.pop %v632
    %v659 = vtanh.pop %v637
    %v660 = vtanh.pop %v642
    %v661 = vtanh.pop %v647
    %v662 = vtanh.pop %v652
    %v663 = vld [vmem:[#allocation14] sm:$0x3]
    %v664 = vld [vmem:[#allocation16] sm:$0x3]
    %666 = vset.pattern.permute.xlu0 0
    %667 = vperm.xlu0 %666, %v664
    %v668 = vpop.permute.xlu0 %667
    %v671 = vsel %vm332, %v663, 0
    %673 = vmatprep.subr.mxu0 0.0
    %674 = vmatpush1.msra.mxu0 %v655
    %675 = vmatprep.subr.mxu0 0.0
    %676 = vmatpush1.msra.mxu0 %v656
    %677 = vmatprep.subr.mxu0 0.0
    %678 = vmatpush1.msra.mxu0 %v657
    %679 = vmatprep.subr.mxu0 0.0
    %680 = vmatpush1.msra.mxu0 %v658
    %681 = vmatprep.subr.mxu0 0.0
    %682 = vmatpush1.msra.mxu0 %v659
    %683 = vmatprep.subr.mxu0 0.0
    %684 = vmatpush1.msra.mxu0 %v660
    %685 = vmatprep.subr.mxu0 0.0
    %686 = vmatpush1.msra.mxu0 %v661
    %687 = vmatprep.subr.mxu0 0.0
    %688 = vmatpush1.msra.mxu0 %v662
    %689 = vmatprep.subr.mxu0 0.0
    %690 = vmatpush1.msra.mxu0 0.0
    %691 = vmatprep.subr.mxu0 0.0
    %692 = vmatpush1.msra.mxu0 0.0
    %693 = vmatprep.subr.mxu0 0.0
    %694 = vmatpush1.msra.mxu0 0.0
    %695 = vmatprep.subr.mxu0 0.0
    %696 = vmatpush1.msra.mxu0 0.0
    %697 = vmatprep.subr.mxu0 0.0
    %698 = vmatpush1.msra.mxu0 0.0
    %699 = vmatprep.subr.mxu0 0.0
    %700 = vmatpush1.msra.mxu0 0.0
    %701 = vmatprep.subr.mxu0 0.0
    %702 = vmatpush1.msra.mxu0 0.0
    %703 = vmatprep.subr.mxu0 0.0
    %704 = vmatpush1.msra.mxu0 0.0
    %705 = vmatprep.subr.mxu0 0.0
    %706 = vmatpush1.msra.mxu0 0.0
    %707 = vmatprep.subr.mxu0 0.0
    %708 = vmatpush1.msra.mxu0 0.0
    %709 = vmatprep.subr.mxu0 0.0
    %710 = vmatpush1.msra.mxu0 0.0
    %711 = vmatprep.subr.mxu0 0.0
    %712 = vmatpush1.msra.mxu0 0.0
    %713 = vmatprep.subr.mxu0 0.0
    %714 = vmatpush1.msra.mxu0 0.0
    %715 = vmatprep.subr.mxu0 0.0
    %716 = vmatpush1.msra.mxu0 0.0
    %717 = vmatprep.subr.mxu0 0.0
    %718 = vmatpush1.msra.mxu0 0.0
    %719 = vmatprep.subr.mxu0 0.0
    %720 = vmatpush1.msra.mxu0 0.0
    %721 = vmatprep.subr.mxu0 0.0
    %722 = vmatpush1.msra.mxu0 0.0
    %723 = vmatprep.subr.mxu0 0.0
    %724 = vmatpush1.msra.mxu0 0.0
    %725 = vmatprep.subr.mxu0 0.0
    %726 = vmatpush1.msra.mxu0 0.0
    %727 = vmatprep.subr.mxu0 0.0
    %728 = vmatpush1.msra.mxu0 0.0
    %729 = vmatprep.subr.mxu0 0.0
    %730 = vmatpush1.msra.mxu0 0.0
    %731 = vmatprep.subr.mxu0 0.0
    %732 = vmatpush1.msra.mxu0 0.0
    %733 = vmatprep.subr.mxu0 0.0
    %734 = vmatpush1.msra.mxu0 0.0
    %735 = vmatprep.subr.mxu0 0.0
    %736 = vmatpush1.msra.mxu0 0.0
    %737 = vmatprep.mubr.f32.mxu0 0.0
    %738 = vmatmul.mubr.f32.gmra.mrb[0].mxu0 %v671
    %v739 = vpop.f32.mrb[0].mxu0
    %v740 = vadd.f32 %v668, %v739
    %v741 = vpop.f32.mrb[0].mxu0
    %742 = vdwg.mxu0
    %743 = vst [vmem:[#allocation17] sm:$0x3] %v740
    // Predicated region
    $region74: #{tpu_custom_call.1} parent=1 // pred_check
      _
    $region75: #{tpu_custom_call.1} parent=1 // pred_check_branch
      %745 = sbr.rel (0) target = $region77
    $region76: #{tpu_custom_call.1} parent=1 // pred_region
      %s747 = ssub.s32 32, 32
      %748 = vsyncadd [#allocation4], %s747
      %s750 = sshll.u32 [#allocation17], 4
      %s751 = int_to_ptr.vmem [resolvable:$true] %s750
      %753 = dma.vmem_to_hbm [thread:$0]  %s751, 32, %s9, [#allocation4]
    $region77: #{tpu_custom_call.1} parent=1 // pred_fallthru
      _
    // Predicated region
    $region78: #{tpu_custom_call.1} parent=1 // pred_check
      _
    $region79: #{tpu_custom_call.1} parent=1 // pred_check_branch
      %755 = sbr.rel (0) target = $region81
    $region80: #{tpu_custom_call.1} parent=1 // pred_region
      %756 = dma.done [#allocation4], 32
    $region81: #{tpu_custom_call.1} parent=1 // pred_fallthru
      _
    %757 = vsyncpa [#allocation3], 1
    %758 = vsyncpa [#allocation6], 1
    %759 = vsyncpa [#allocation9], 1
    %760 = vsyncpa [#allocation12], 1
    %761 = vsyncpa [#allocation15], 1
    %762 = vsyncpa [#allocation4], 1

</llo_original>
